<compile_context>
chip_gen: v7x
topology: tpu7x:2x2x1
jax: 0.10.0
libtpu: 0.0.40
codegen_flags: <defaults>
</compile_context>

<pallas_src>
import functools

import jax
import jax.numpy as jnp
from jax import lax
from jax.experimental import pallas as pl
from jax.experimental.pallas import tpu as pltpu

_BIG = 1e30
_LANES = 128


def _round_up(x, m):
    return ((x + m - 1) // m) * m


def _triplet_kernel(xm2_row_ref, x_col_ref, sq_row_ref, sq_col_ref,
                    t_row_ref, t_col_ref, out_ref,
                    ap_acc_ref, an_acc_ref, *, margin, tn):
    j = pl.program_id(1)

    @pl.when(j == 0)
    def _():
        ap_acc_ref[...] = jnp.full(ap_acc_ref.shape, -_BIG, dtype=jnp.float32)
        an_acc_ref[...] = jnp.full(an_acc_ref.shape, _BIG, dtype=jnp.float32)

    # Gram tile on the MXU (bf16 inputs, f32 accumulate).  The row operand is pre-scaled
    # by -2 in the wrapper, so gram == -2 * x_i . x_j.  Contracting dim 1 of both operands
    # means no in-kernel transpose.
    gram = lax.dot_general(xm2_row_ref[...], x_col_ref[...],
                           (((1,), (1,)), ((), ())),
                           preferred_element_type=jnp.float32)          # (TM, TN)

    # v = ||x_j||^2 - 2 x_i.x_j ; the per-row ||x_i||^2 and the 1e-12 clamp are deferred
    # to the finalize step (max/min commute with adding a per-row constant / clamping).
    v = sq_col_ref[...] + gram                                          # (TM, TN)
    same = t_row_ref[...] == t_col_ref[...]                             # (TM, TN)

    # Fold aligned 128-lane slices elementwise into (TM,128) running accumulators (VPU);
    # the cross-lane reduce (XLU) happens only once, in the finalize step.
    ap = ap_acc_ref[...]
    an = an_acc_ref[...]
    for c in range(tn // _LANES):
        lo, hi = c * _LANES, (c + 1) * _LANES
        vc = v[:, lo:hi]
        sc = same[:, lo:hi]
        ap = jnp.maximum(ap, jnp.where(sc, vc, -_BIG))
        an = jnp.minimum(an, jnp.where(sc, _BIG, vc))
    ap_acc_ref[...] = ap
    an_acc_ref[...] = an

    @pl.when(j == pl.num_programs(1) - 1)
    def _():
        sq_row = sq_row_ref[...]                                        # (TM, 1) f32
        ap2 = jnp.maximum(jnp.max(ap_acc_ref[...], axis=1, keepdims=True) + sq_row, 1e-12)
        an2 = jnp.maximum(jnp.min(an_acc_ref[...], axis=1, keepdims=True) + sq_row, 1e-12)
        dist_ap = jnp.sqrt(ap2)
        dist_an = jnp.sqrt(an2)
        out_ref[...] = jnp.maximum(dist_ap - dist_an + jnp.float32(margin), 0.0)


def triplet_loss(inputs, targets, margin=5.0):
    """inputs: (n, d) float features; targets: (n,) int labels. Returns scalar loss."""
    n, d = inputs.shape
    x = jnp.asarray(inputs, jnp.float32)
    t = jnp.asarray(targets, jnp.int32)

    # --- tile selection (tn is always a multiple of 128 for the lane-fold) ---
    if n <= 512:
        n_pad = _round_up(n, _LANES)       # single tile
        tm = tn = n_pad
    else:
        n_pad = _round_up(n, 256)          # 256-granular padding for ragged n
        tn = 256
        tm = 512 if n_pad % 512 == 0 else 256

    # --- padding (skipped entirely when n is already aligned) ---
    if n_pad == n:
        x_p, t_p = x, t
    else:
        x_p = jnp.zeros((n_pad, d), jnp.float32).at[:n].set(x)
        t_p = jnp.full((n_pad,), -1, jnp.int32).at[:n].set(t)

    # Squared norms in f32 (exact), hoisted out of the kernel.
    sq = jnp.sum(x_p * x_p, axis=1)                                     # (n_pad,)
    sq_row = sq.reshape(n_pad, 1)
    if n_pad == n:
        sq_col = sq.reshape(1, n_pad)
    else:
        # Padded columns get +BIG so they can never win the hardest-negative min;
        # padded labels are -1, so they are never positives for real rows.
        col_valid = jnp.arange(n_pad) < n
        sq_col = jnp.where(col_valid, sq, _BIG).reshape(1, n_pad)

    # bf16 MXU operands; row operand pre-scaled by -2 (exact), so the kernel does
    # v = sq_col + gram with no extra (TM,TN) multiply.
    xm2_row = (x_p * -2.0).astype(jnp.bfloat16)
    x_col = x_p.astype(jnp.bfloat16)

    t_row = t_p.reshape(n_pad, 1)
    t_col = t_p.reshape(1, n_pad)

    # --- VMEM budget: derive scoped limit from the chip's capacity (v7x has 64 MiB) ---
    try:
        vmem_cap = int(pltpu.get_tpu_info().vmem_capacity_bytes)
    except Exception:
        vmem_cap = 64 * 1024 * 1024        # conservative fallback, safe on all gens
    vmem_limit = min(96 * 1024 * 1024, (vmem_cap * 3) // 4)

    grid = (n_pad // tm, n_pad // tn)
    kernel = functools.partial(_triplet_kernel, margin=float(margin), tn=tn)

    per_row = pl.pallas_call(
        kernel,
        out_shape=jax.ShapeDtypeStruct((n_pad, 1), jnp.float32),
        grid_spec=pltpu.PrefetchScalarGridSpec(
            num_scalar_prefetch=0,
            grid=grid,
            in_specs=[
                pl.BlockSpec((tm, d), lambda i, j: (i, 0)),   # -2*x row block (bf16)
                pl.BlockSpec((tn, d), lambda i, j: (j, 0)),   # x col block    (bf16)
                pl.BlockSpec((tm, 1), lambda i, j: (i, 0)),   # ||x_i||^2      (f32)
                pl.BlockSpec((1, tn), lambda i, j: (0, j)),   # ||x_j||^2 (+BIG on pads)
                pl.BlockSpec((tm, 1), lambda i, j: (i, 0)),   # labels (rows)
                pl.BlockSpec((1, tn), lambda i, j: (0, j)),   # labels (cols)
            ],
            out_specs=pl.BlockSpec((tm, 1), lambda i, j: (i, 0)),
            scratch_shapes=[pltpu.VMEM((tm, _LANES), jnp.float32),   # running max of v (positives)
                            pltpu.VMEM((tm, _LANES), jnp.float32)],  # running min of v (negatives)
        ),
        compiler_params=pltpu.CompilerParams(
            dimension_semantics=("parallel", "arbitrary"),
            vmem_limit_bytes=vmem_limit),
    )(xm2_row, x_col, sq_row, sq_col, t_row, t_col)

    # Exclude padded rows from the mean (MarginRankingLoss 'mean' reduction).
    return jnp.mean(per_row[:n, 0])


def _reference(inputs, targets, margin):
    sq = jnp.sum(inputs * inputs, axis=1, keepdims=True)
    dist = jnp.sqrt(jnp.maximum(sq + sq.T - 2.0 * inputs @ inputs.T, 1e-12))
    same = targets[:, None] == targets[None, :]
    dist_ap = jnp.max(jnp.where(same, dist, -_BIG), axis=1)
    dist_an = jnp.min(jnp.where(same, _BIG, dist), axis=1)
    return jnp.mean(jnp.maximum(dist_ap - dist_an + margin, 0.0))


if __name__ == "__main__":
    key = jax.random.PRNGKey(0)
    k1, k2, k3, k4 = jax.random.split(key, 4)

    # Tolerances are loosened slightly vs. the f32 reference because the Gram matmul
    # runs in bf16 (f32-accumulated); squared norms stay f32.
    RTOL, ATOL = 2e-2, 5e-2

    # Case 1: n multiple of 8 (single-tile path, no padding of real data semantics).
    n1, d1 = 8, 32
    x1 = jax.random.normal(k1, (n1, d1), dtype=jnp.float32)
    t1 = jnp.array([0, 0, 1, 1, 2, 2, 3, 3], dtype=jnp.int32)
    loss1 = triplet_loss(x1, t1, margin=5.0)
    jax.block_until_ready(loss1)
    ref1 = _reference(x1, t1, 5.0)
    assert jnp.allclose(loss1, ref1, rtol=RTOL, atol=ATOL), (loss1, ref1)

    # Case 2: ragged n (exercises row/column padding handling).
    n2, d2 = 10, 32
    x2 = jax.random.normal(k2, (n2, d2), dtype=jnp.float32)
    t2 = jnp.array([0, 0, 1, 1, 2, 2, 3, 3, 4, 4], dtype=jnp.int32)
    loss2 = triplet_loss(x2, t2, margin=5.0)
    jax.block_until_ready(loss2)
    ref2 = _reference(x2, t2, 5.0)
    assert jnp.allclose(loss2, ref2, rtol=RTOL, atol=ATOL), (loss2, ref2)

    # Case 3: n > 512 (exercises the multi-tile grid, cross-tile accumulators and padding).
    n3, d3 = 600, 16
    x3 = jax.random.normal(k3, (n3, d3), dtype=jnp.float32)
    t3 = jax.random.randint(k4, (n3,), 0, 50, dtype=jnp.int32)
    loss3 = triplet_loss(x3, t3, margin=5.0)
    jax.block_until_ready(loss3)
    ref3 = _reference(x3, t3, 5.0)
    assert jnp.allclose(loss3, ref3, rtol=RTOL, atol=ATOL), (loss3, ref3)

    print("KERNEL_OK")
</pallas_src>

<mosaic_0001>
module attributes {stable_mosaic.version = 11 : i64} {
  func.func @_triplet_kernel(%arg0: i32, %arg1: i32, %arg2: memref<128x32xbf16, #tpu.memory_space<vmem>>, %arg3: memref<128x32xbf16, #tpu.memory_space<vmem>>, %arg4: memref<128x1xf32, #tpu.memory_space<vmem>>, %arg5: memref<1x128xf32, #tpu.memory_space<vmem>>, %arg6: memref<128x1xi32, #tpu.memory_space<vmem>>, %arg7: memref<1x128xi32, #tpu.memory_space<vmem>>, %arg8: memref<128x1xf32, #tpu.memory_space<vmem>>, %arg9: memref<128x128xf32, #tpu.memory_space<vmem>>, %arg10: memref<128x128xf32, #tpu.memory_space<vmem>>) attributes {dimension_semantics = [#tpu.dimension_semantics<parallel>, #tpu.dimension_semantics<arbitrary>], iteration_bounds = array<i64: 1, 1>, scalar_prefetch = 0 : i64, scratch_operands = 2 : i64, tpu.core_type = #tpu.core_type<tc>, window_params = [{transform_indices = @transform_0, window_bounds = array<i64: 128, 32>}, {transform_indices = @transform_1, window_bounds = array<i64: 128, 32>}, {transform_indices = @transform_2, window_bounds = array<i64: 128, 1>}, {transform_indices = @transform_3, window_bounds = array<i64: 1, 128>}, {transform_indices = @transform_4, window_bounds = array<i64: 128, 1>}, {transform_indices = @transform_5, window_bounds = array<i64: 1, 128>}, {transform_indices = @transform_6, window_bounds = array<i64: 128, 1>}]} {
    %c0_i32 = arith.constant 0 : i32
    %0 = arith.cmpi eq, %arg1, %c0_i32 : i32
    %1 = arith.extui %0 : i1 to i32
    %c0_i32_0 = arith.constant 0 : i32
    %2 = arith.cmpi ne, %1, %c0_i32_0 : i32
    scf.if %2 {
      %cst_22 = arith.constant -1.000000e+30 : f32
      %27 = vector.broadcast %cst_22 : f32 to vector<128x128xf32>
      %c0_23 = arith.constant 0 : index
      %c0_24 = arith.constant 0 : index
      %28 = vector.load %arg9[%c0_23, %c0_24] : memref<128x128xf32, #tpu.memory_space<vmem>>, vector<128x128xf32>
      tpu.vector_store %arg9[%c0_23, %c0_24], %27 {strides = array<i32>} : memref<128x128xf32, #tpu.memory_space<vmem>>, vector<128x128xf32>,
      %cst_25 = arith.constant 1.000000e+30 : f32
      %29 = vector.broadcast %cst_25 : f32 to vector<128x128xf32>
      %c0_26 = arith.constant 0 : index
      %c0_27 = arith.constant 0 : index
      %30 = vector.load %arg10[%c0_26, %c0_27] : memref<128x128xf32, #tpu.memory_space<vmem>>, vector<128x128xf32>
      tpu.vector_store %arg10[%c0_26, %c0_27], %29 {strides = array<i32>} : memref<128x128xf32, #tpu.memory_space<vmem>>, vector<128x128xf32>,
    } else {
    }
    %c0 = arith.constant 0 : index
    %c0_1 = arith.constant 0 : index
    %3 = vector.load %arg2[%c0, %c0_1] : memref<128x32xbf16, #tpu.memory_space<vmem>>, vector<128x32xbf16>
    %c0_2 = arith.constant 0 : index
    %c0_3 = arith.constant 0 : index
    %4 = vector.load %arg3[%c0_2, %c0_3] : memref<128x32xbf16, #tpu.memory_space<vmem>>, vector<128x32xbf16>
    %cst = arith.constant dense<0.000000e+00> : vector<128x128xf32>
    %5 = tpu.matmul %3, %4, %cst {dimension_numbers = #tpu.dot_dimension_numbers<[1], [1], [0], [0], [0, 0, 1, 0], [], []>} : vector<128x32xbf16>, vector<128x32xbf16>, vector<128x128xf32> -> vector<128x128xf32>
    %c0_4 = arith.constant 0 : index
    %c0_5 = arith.constant 0 : index
    %6 = vector.load %arg5[%c0_4, %c0_5] : memref<1x128xf32, #tpu.memory_space<vmem>>, vector<1x128xf32>
    %7 = vector.broadcast %6 : vector<1x128xf32> to vector<128x128xf32>
    %8 = arith.addf %7, %5 : vector<128x128xf32>
    %c0_6 = arith.constant 0 : index
    %c0_7 = arith.constant 0 : index
    %9 = vector.load %arg6[%c0_6, %c0_7] : memref<128x1xi32, #tpu.memory_space<vmem>>, vector<128x1xi32>
    %c0_8 = arith.constant 0 : index
    %c0_9 = arith.constant 0 : index
    %10 = vector.load %arg7[%c0_8, %c0_9] : memref<1x128xi32, #tpu.memory_space<vmem>>, vector<1x128xi32>
    %11 = vector.broadcast %9 : vector<128x1xi32> to vector<128x128xi32>
    %12 = vector.broadcast %10 : vector<1x128xi32> to vector<128x128xi32>
    %13 = arith.cmpi eq, %11, %12 : vector<128x128xi32>
    %c0_10 = arith.constant 0 : index
    %c0_11 = arith.constant 0 : index
    %14 = vector.load %arg9[%c0_10, %c0_11] : memref<128x128xf32, #tpu.memory_space<vmem>>, vector<128x128xf32>
    %c0_12 = arith.constant 0 : index
    %c0_13 = arith.constant 0 : index
    %15 = vector.load %arg10[%c0_12, %c0_13] : memref<128x128xf32, #tpu.memory_space<vmem>>, vector<128x128xf32>
    %cst_14 = arith.constant -1.000000e+30 : f32
    %16 = vector.broadcast %cst_14 : f32 to vector<128x128xf32>
    %17 = arith.select %13, %8, %16 : vector<128x128xi1>, vector<128x128xf32>
    %18 = arith.maximumf %14, %17 : vector<128x128xf32>
    %cst_15 = arith.constant 1.000000e+30 : f32
    %19 = vector.broadcast %cst_15 : f32 to vector<128x128xf32>
    %20 = arith.select %13, %19, %8 : vector<128x128xi1>, vector<128x128xf32>
    %21 = arith.minimumf %15, %20 : vector<128x128xf32>
    %c0_16 = arith.constant 0 : index
    %c0_17 = arith.constant 0 : index
    %22 = vector.load %arg9[%c0_16, %c0_17] : memref<128x128xf32, #tpu.memory_space<vmem>>, vector<128x128xf32>
    tpu.vector_store %arg9[%c0_16, %c0_17], %18 {strides = array<i32>} : memref<128x128xf32, #tpu.memory_space<vmem>>, vector<128x128xf32>,
    %c0_18 = arith.constant 0 : index
    %c0_19 = arith.constant 0 : index
    %23 = vector.load %arg10[%c0_18, %c0_19] : memref<128x128xf32, #tpu.memory_space<vmem>>, vector<128x128xf32>
    tpu.vector_store %arg10[%c0_18, %c0_19], %21 {strides = array<i32>} : memref<128x128xf32, #tpu.memory_space<vmem>>, vector<128x128xf32>,
    %c0_i32_20 = arith.constant 0 : i32
    %24 = arith.cmpi eq, %arg1, %c0_i32_20 : i32
    %25 = arith.extui %24 : i1 to i32
    %c0_i32_21 = arith.constant 0 : i32
    %26 = arith.cmpi ne, %25, %c0_i32_21 : i32
    scf.if %26 {
      %c0_22 = arith.constant 0 : index
      %c0_23 = arith.constant 0 : index
      %27 = vector.load %arg4[%c0_22, %c0_23] : memref<128x1xf32, #tpu.memory_space<vmem>>, vector<128x1xf32>
      %c0_24 = arith.constant 0 : index
      %c0_25 = arith.constant 0 : index
      %28 = vector.load %arg9[%c0_24, %c0_25] : memref<128x128xf32, #tpu.memory_space<vmem>>, vector<128x128xf32>
      %cst_26 = arith.constant dense<0xFF800000> : vector<128xf32>
      %29 = vector.multi_reduction <maximumf>, %28, %cst_26 [1] : vector<128x128xf32> to vector<128xf32>
      %30 = vector.shape_cast %29 : vector<128xf32> to vector<128x1xf32>
      %31 = arith.addf %30, %27 : vector<128x1xf32>
      %cst_27 = arith.constant 9.99999996E-13 : f32
      %32 = vector.broadcast %cst_27 : f32 to vector<128x1xf32>
      %33 = arith.maximumf %31, %32 : vector<128x1xf32>
      %c0_28 = arith.constant 0 : index
      %c0_29 = arith.constant 0 : index
      %34 = vector.load %arg10[%c0_28, %c0_29] : memref<128x128xf32, #tpu.memory_space<vmem>>, vector<128x128xf32>
      %cst_30 = arith.constant dense<0x7F800000> : vector<128xf32>
      %35 = vector.multi_reduction <minimumf>, %34, %cst_30 [1] : vector<128x128xf32> to vector<128xf32>
      %36 = vector.shape_cast %35 : vector<128xf32> to vector<128x1xf32>
      %37 = arith.addf %36, %27 : vector<128x1xf32>
      %cst_31 = arith.constant 9.99999996E-13 : f32
      %38 = vector.broadcast %cst_31 : f32 to vector<128x1xf32>
      %39 = arith.maximumf %37, %38 : vector<128x1xf32>
      %40 = math.sqrt %33 : vector<128x1xf32>
      %41 = math.sqrt %39 : vector<128x1xf32>
      %42 = arith.subf %40, %41 : vector<128x1xf32>
      %cst_32 = arith.constant 5.000000e+00 : f32
      %43 = vector.broadcast %cst_32 : f32 to vector<128x1xf32>
      %44 = arith.addf %42, %43 : vector<128x1xf32>
      %cst_33 = arith.constant 0.000000e+00 : f32
      %45 = vector.broadcast %cst_33 : f32 to vector<128x1xf32>
      %46 = arith.maximumf %44, %45 : vector<128x1xf32>
      %c0_34 = arith.constant 0 : index
      %c0_35 = arith.constant 0 : index
      %47 = vector.load %arg8[%c0_34, %c0_35] : memref<128x1xf32, #tpu.memory_space<vmem>>, vector<128x1xf32>
      tpu.vector_store %arg8[%c0_34, %c0_35], %46 {strides = array<i32>} : memref<128x1xf32, #tpu.memory_space<vmem>>, vector<128x1xf32>,
    } else {
    }
    return
  }
  func.func @transform_0(%arg0: i32, %arg1: i32) -> (i32, i32) {
    %c0_i32 = arith.constant 0 : i32
    %c0_i32_0 = arith.constant 0 : i32
    return %arg0, %c0_i32 : i32, i32
  }
  func.func @transform_1(%arg0: i32, %arg1: i32) -> (i32, i32) {
    %c0_i32 = arith.constant 0 : i32
    %c0_i32_0 = arith.constant 0 : i32
    return %arg1, %c0_i32 : i32, i32
  }
  func.func @transform_2(%arg0: i32, %arg1: i32) -> (i32, i32) {
    %c0_i32 = arith.constant 0 : i32
    %c0_i32_0 = arith.constant 0 : i32
    return %arg0, %c0_i32 : i32, i32
  }
  func.func @transform_3(%arg0: i32, %arg1: i32) -> (i32, i32) {
    %c0_i32 = arith.constant 0 : i32
    %c0_i32_0 = arith.constant 0 : i32
    return %c0_i32, %arg1 : i32, i32
  }
  func.func @transform_4(%arg0: i32, %arg1: i32) -> (i32, i32) {
    %c0_i32 = arith.constant 0 : i32
    %c0_i32_0 = arith.constant 0 : i32
    return %arg0, %c0_i32 : i32, i32
  }
  func.func @transform_5(%arg0: i32, %arg1: i32) -> (i32, i32) {
    %c0_i32 = arith.constant 0 : i32
    %c0_i32_0 = arith.constant 0 : i32
    return %c0_i32, %arg1 : i32, i32
  }
  func.func @transform_6(%arg0: i32, %arg1: i32) -> (i32, i32) {
    %c0_i32 = arith.constant 0 : i32
    %c0_i32_0 = arith.constant 0 : i32
    return %arg0, %c0_i32 : i32, i32
  }
}

</mosaic_0001>

<llo_original>
// kernel: tpu_custom_call.1
$region0: #{tpu_custom_call.1}
  #allocation0 [shape = 'u32[]', space=smem, size = 0x4, offset = 0x4, fixed_abs, tag = 'smem constant byte address 0x4 - core index']
  #allocation1 [shape = 'u32[144,128]{1,0:T(1,128)}', space=vmem, size = 0x12000, scoped, tag = 'internal scratch']
  #allocation2 [shape = 'f32[128,128]{1,0:T(8,128)}', space=vmem, size = 0x10000, scoped, tag = 'scratch operand']
  #allocation3 [shape = 'f32[128,128]{1,0:T(8,128)}', space=vmem, size = 0x10000, scoped, tag = 'scratch operand']
  %s0 = inlined_call_operand.vmem [shape: bf16[128,32], index: 0, kind: input, shape index: {}]
  %s1 = inlined_call_operand.vmem [shape: bf16[128,32], index: 1, kind: input, shape index: {}]
  %s2 = inlined_call_operand.vmem [shape: f32[128,1], index: 2, kind: input, shape index: {}]
  %s3 = inlined_call_operand.vmem [shape: f32[1,128], index: 3, kind: input, shape index: {}]
  %s4 = inlined_call_operand.vmem [shape: s32[128,1], index: 4, kind: input, shape index: {}]
  %s5 = inlined_call_operand.vmem [shape: s32[1,128], index: 5, kind: input, shape index: {}]
  %s6 = inlined_call_operand.vmem [shape: f32[128,1], index: 6, kind: output, shape index: {}]
  %s7 = sld [smem:[#allocation0]]
  $region42: #{tpu_custom_call.1} parent=0
    _
  %s9 = ssub.s32 1, %s7
  %s10 = scalar_select 0, %s9, %s7
  // Predicated region
  $region2: #{tpu_custom_call.1} parent=0 // pred_check
    _
  $region3: #{tpu_custom_call.1} parent=0 // pred_check_branch
    %12 = sbr.rel (0) target = $region5
  $region4: #{tpu_custom_call.1} parent=0 // pred_region
    _
  $region5: #{tpu_custom_call.1} parent=0 // pred_fallthru
    _
  // Predicated region
  $region6: #{tpu_custom_call.1} parent=0 // pred_check
    _
  $region7: #{tpu_custom_call.1} parent=0 // pred_check_branch
    %14 = sbr.rel (0) target = $region9
  $region8: #{tpu_custom_call.1} parent=0 // pred_region
    _
  $region9: #{tpu_custom_call.1} parent=0 // pred_fallthru
    _
  // Predicated region
  $region10: #{tpu_custom_call.1} parent=0 // pred_check
    _
  $region11: #{tpu_custom_call.1} parent=0 // pred_check_branch
    %16 = sbr.rel (0) target = $region13
  $region12: #{tpu_custom_call.1} parent=0 // pred_region
    _
  $region13: #{tpu_custom_call.1} parent=0 // pred_fallthru
    _
  // Predicated region
  $region14: #{tpu_custom_call.1} parent=0 // pred_check
    _
  $region15: #{tpu_custom_call.1} parent=0 // pred_check_branch
    %18 = sbr.rel (0) target = $region17
  $region16: #{tpu_custom_call.1} parent=0 // pred_region
    _
  $region17: #{tpu_custom_call.1} parent=0 // pred_fallthru
    _
  // Predicated region
  $region18: #{tpu_custom_call.1} parent=0 // pred_check
    _
  $region19: #{tpu_custom_call.1} parent=0 // pred_check_branch
    %20 = sbr.rel (0) target = $region21
  $region20: #{tpu_custom_call.1} parent=0 // pred_region
    _
  $region21: #{tpu_custom_call.1} parent=0 // pred_fallthru
    _
  // Predicated region
  $region22: #{tpu_custom_call.1} parent=0 // pred_check
    _
  $region23: #{tpu_custom_call.1} parent=0 // pred_check_branch
    %22 = sbr.rel (0) target = $region25
  $region24: #{tpu_custom_call.1} parent=0 // pred_region
    _
  $region25: #{tpu_custom_call.1} parent=0 // pred_fallthru
    _
  %p24 = scmp.eq.s32.totalorder 0, 0
  // Predicated region
  $region26: #{tpu_custom_call.1} parent=0 // pred_check
    %p25 = pneg %p24
  $region27: #{tpu_custom_call.1} parent=0 // pred_check_branch
    %27 = sbr.rel (%p25) target = $region29
  $region28: #{tpu_custom_call.1} parent=0 // pred_region
    %28 = vst [vmem:[#allocation2] sm:$0xff] -1e+30
    %29 = vst [vmem:[#allocation2 + $0x8] sm:$0xff] -1e+30
    %30 = vst [vmem:[#allocation2 + $0x10] sm:$0xff] -1e+30
    %31 = vst [vmem:[#allocation2 + $0x18] sm:$0xff] -1e+30
    %32 = vst [vmem:[#allocation2 + $0x20] sm:$0xff] -1e+30
    %33 = vst [vmem:[#allocation2 + $0x28] sm:$0xff] -1e+30
    %34 = vst [vmem:[#allocation2 + $0x30] sm:$0xff] -1e+30
    %35 = vst [vmem:[#allocation2 + $0x38] sm:$0xff] -1e+30
    %36 = vst [vmem:[#allocation2 + $0x40] sm:$0xff] -1e+30
    %37 = vst [vmem:[#allocation2 + $0x48] sm:$0xff] -1e+30
    %38 = vst [vmem:[#allocation2 + $0x50] sm:$0xff] -1e+30
    %39 = vst [vmem:[#allocation2 + $0x58] sm:$0xff] -1e+30
    %40 = vst [vmem:[#allocation2 + $0x60] sm:$0xff] -1e+30
    %41 = vst [vmem:[#allocation2 + $0x68] sm:$0xff] -1e+30
    %42 = vst [vmem:[#allocation2 + $0x70] sm:$0xff] -1e+30
    %43 = vst [vmem:[#allocation2 + $0x78] sm:$0xff] -1e+30
    %44 = vst [vmem:[#allocation3] sm:$0xff] 1e+30
    %45 = vst [vmem:[#allocation3 + $0x8] sm:$0xff] 1e+30
    %46 = vst [vmem:[#allocation3 + $0x10] sm:$0xff] 1e+30
    %47 = vst [vmem:[#allocation3 + $0x18] sm:$0xff] 1e+30
    %48 = vst [vmem:[#allocation3 + $0x20] sm:$0xff] 1e+30
    %49 = vst [vmem:[#allocation3 + $0x28] sm:$0xff] 1e+30
    %50 = vst [vmem:[#allocation3 + $0x30] sm:$0xff] 1e+30
    %51 = vst [vmem:[#allocation3 + $0x38] sm:$0xff] 1e+30
    %52 = vst [vmem:[#allocation3 + $0x40] sm:$0xff] 1e+30
    %53 = vst [vmem:[#allocation3 + $0x48] sm:$0xff] 1e+30
    %54 = vst [vmem:[#allocation3 + $0x50] sm:$0xff] 1e+30
    %55 = vst [vmem:[#allocation3 + $0x58] sm:$0xff] 1e+30
    %56 = vst [vmem:[#allocation3 + $0x60] sm:$0xff] 1e+30
    %57 = vst [vmem:[#allocation3 + $0x68] sm:$0xff] 1e+30
    %58 = vst [vmem:[#allocation3 + $0x70] sm:$0xff] 1e+30
    %59 = vst [vmem:[#allocation3 + $0x78] sm:$0xff] 1e+30
  $region29: #{tpu_custom_call.1} parent=0 // pred_fallthru
    _
  %v60 = vld [vmem:[%s0] sm:$0xf]
  %v61 = vld [vmem:[%s0 + $0x4] sm:$0xf]
  %v62 = vld [vmem:[%s0 + $0x8] sm:$0xf]
  %v63 = vld [vmem:[%s0 + $0xc] sm:$0xf]
  %v64 = vld [vmem:[%s0 + $0x10] sm:$0xf]
  %v65 = vld [vmem:[%s0 + $0x14] sm:$0xf]
  %v66 = vld [vmem:[%s0 + $0x18] sm:$0xf]
  %v67 = vld [vmem:[%s0 + $0x1c] sm:$0xf]
  %v68 = vld [vmem:[%s0 + $0x20] sm:$0xf]
  %v69 = vld [vmem:[%s0 + $0x24] sm:$0xf]
  %v70 = vld [vmem:[%s0 + $0x28] sm:$0xf]
  %v71 = vld [vmem:[%s0 + $0x2c] sm:$0xf]
  %v72 = vld [vmem:[%s0 + $0x30] sm:$0xf]
  %v73 = vld [vmem:[%s0 + $0x34] sm:$0xf]
  %v74 = vld [vmem:[%s0 + $0x38] sm:$0xf]
  %v75 = vld [vmem:[%s0 + $0x3c] sm:$0xf]
  %v76 = vld [vmem:[%s1] sm:$0xf]
  %v77 = vld [vmem:[%s1 + $0x4] sm:$0xf]
  %v78 = vld [vmem:[%s1 + $0x8] sm:$0xf]
  %v79 = vld [vmem:[%s1 + $0xc] sm:$0xf]
  %v80 = vld [vmem:[%s1 + $0x10] sm:$0xf]
  %v81 = vld [vmem:[%s1 + $0x14] sm:$0xf]
  %v82 = vld [vmem:[%s1 + $0x18] sm:$0xf]
  %v83 = vld [vmem:[%s1 + $0x1c] sm:$0xf]
  %v84 = vld [vmem:[%s1 + $0x20] sm:$0xf]
  %v85 = vld [vmem:[%s1 + $0x24] sm:$0xf]
  %v86 = vld [vmem:[%s1 + $0x28] sm:$0xf]
  %v87 = vld [vmem:[%s1 + $0x2c] sm:$0xf]
  %v88 = vld [vmem:[%s1 + $0x30] sm:$0xf]
  %v89 = vld [vmem:[%s1 + $0x34] sm:$0xf]
  %v90 = vld [vmem:[%s1 + $0x38] sm:$0xf]
  %v91 = vld [vmem:[%s1 + $0x3c] sm:$0xf]
  %v108 = vunpack.c.l.b16 %v60
  %v109 = vunpack.c.l.b16 %v61
  %v110 = vunpack.c.l.b16 %v62
  %v111 = vunpack.c.l.b16 %v63
  %v112 = vunpack.c.l.b16 %v64
  %v113 = vunpack.c.l.b16 %v65
  %v114 = vunpack.c.l.b16 %v66
  %v115 = vunpack.c.l.b16 %v67
  %v116 = vunpack.c.l.b16 %v68
  %v117 = vunpack.c.l.b16 %v69
  %v118 = vunpack.c.l.b16 %v70
  %v119 = vunpack.c.l.b16 %v71
  %v120 = vunpack.c.l.b16 %v72
  %v121 = vunpack.c.l.b16 %v73
  %v122 = vunpack.c.l.b16 %v74
  %v123 = vunpack.c.l.b16 %v75
  %v124 = vpack.c.b16 %v109, %v108
  %v125 = vpack.c.b16 %v111, %v110
  %v126 = vpack.c.b16 %v113, %v112
  %v127 = vpack.c.b16 %v115, %v114
  %v128 = vpack.c.b16 %v117, %v116
  %v129 = vpack.c.b16 %v119, %v118
  %v130 = vpack.c.b16 %v121, %v120
  %v131 = vpack.c.b16 %v123, %v122
  %v148 = vunpack.c.l.b16 %v76
  %v149 = vunpack.c.l.b16 %v77
  %v150 = vunpack.c.l.b16 %v78
  %v151 = vunpack.c.l.b16 %v79
  %v152 = vunpack.c.l.b16 %v80
  %v153 = vunpack.c.l.b16 %v81
  %v154 = vunpack.c.l.b16 %v82
  %v155 = vunpack.c.l.b16 %v83
  %v156 = vunpack.c.l.b16 %v84
  %v157 = vunpack.c.l.b16 %v85
  %v158 = vunpack.c.l.b16 %v86
  %v159 = vunpack.c.l.b16 %v87
  %v160 = vunpack.c.l.b16 %v88
  %v161 = vunpack.c.l.b16 %v89
  %v162 = vunpack.c.l.b16 %v90
  %v163 = vunpack.c.l.b16 %v91
  %v164 = vpack.c.b16 %v149, %v148
  %v165 = vpack.c.b16 %v151, %v150
  %v166 = vpack.c.b16 %v153, %v152
  %v167 = vpack.c.b16 %v155, %v154
  %v168 = vpack.c.b16 %v157, %v156
  %v169 = vpack.c.b16 %v159, %v158
  %v170 = vpack.c.b16 %v161, %v160
  %v171 = vpack.c.b16 %v163, %v162
  %vm172 = vcmask 261120
  %v174 = vsel %vm172, %v124, 0
  %v177 = vsel %vm172, %v125, 0
  %v180 = vsel %vm172, %v126, 0
  %v183 = vsel %vm172, %v127, 0
  %v186 = vsel %vm172, %v128, 0
  %v189 = vsel %vm172, %v129, 0
  %v192 = vsel %vm172, %v130, 0
  %v195 = vsel %vm172, %v131, 0
  %v198 = vsel %vm172, %v164, 0
  %v201 = vsel %vm172, %v165, 0
  %v204 = vsel %vm172, %v166, 0
  %v207 = vsel %vm172, %v167, 0
  %v210 = vsel %vm172, %v168, 0
  %v213 = vsel %vm172, %v169, 0
  %v216 = vsel %vm172, %v170, 0
  %v219 = vsel %vm172, %v171, 0
  %221 = vmatprep.subr.bf16.mxu0 0
  %222 = vmatpush1.bf16.xpose.msra.mxu0 %v198
  %223 = vmatprep.subr.bf16.mxu0 0
  %224 = vmatpush1.bf16.xpose.msra.mxu0 %v201
  %225 = vmatprep.subr.bf16.mxu0 0
  %226 = vmatpush1.bf16.xpose.msra.mxu0 %v204
  %227 = vmatprep.subr.bf16.mxu0 0
  %228 = vmatpush1.bf16.xpose.msra.mxu0 %v207
  %229 = vmatprep.subr.bf16.mxu0 0
  %230 = vmatpush1.bf16.xpose.msra.mxu0 %v210
  %231 = vmatprep.subr.bf16.mxu0 0
  %232 = vmatpush1.bf16.xpose.msra.mxu0 %v213
  %233 = vmatprep.subr.bf16.mxu0 0
  %234 = vmatpush1.bf16.xpose.msra.mxu0 %v216
  %235 = vmatprep.subr.bf16.mxu0 0
  %236 = vmatpush1.bf16.xpose.msra.mxu0 %v219
  %237 = vmatprep.subr.bf16.mxu0 0
  %238 = vmatpush1.bf16.xpose.msra.mxu0 0
  %239 = vmatprep.subr.bf16.mxu0 0
  %240 = vmatpush1.bf16.xpose.msra.mxu0 0
  %241 = vmatprep.subr.bf16.mxu0 0
  %242 = vmatpush1.bf16.xpose.msra.mxu0 0
  %243 = vmatprep.subr.bf16.mxu0 0
  %244 = vmatpush1.bf16.xpose.msra.mxu0 0
  %245 = vmatprep.subr.bf16.mxu0 0
  %246 = vmatpush1.bf16.xpose.msra.mxu0 0
  %247 = vmatprep.subr.bf16.mxu0 0
  %248 = vmatpush1.bf16.xpose.msra.mxu0 0
  %249 = vmatprep.subr.bf16.mxu0 0
  %250 = vmatpush1.bf16.xpose.msra.mxu0 0
  %251 = vmatprep.subr.bf16.mxu0 0
  %252 = vmatpush1.bf16.xpose.msra.mxu0 0
  %253 = vmatprep.mubr.bf16.mxu0 0
  %254 = vmatmul.mubr.bf16.gmra.mrb[0].mxu0 %v174
  %v255 = vpop.f32.mrb[0].mxu0
  %v256 = vadd.f32 0.0, %v255
  %v257 = vpop.f32.mrb[0].mxu0
  %v258 = vpop.f32.mrb[0].mxu0
  %v259 = vadd.f32 0.0, %v258
  %v260 = vpop.f32.mrb[0].mxu0
  %261 = vmatprep.mubr.bf16.mxu0 0
  %262 = vmatmul.mubr.bf16.gmra.mrb[0].mxu0 %v177
  %v263 = vpop.f32.mrb[0].mxu0
  %v264 = vadd.f32 0.0, %v263
  %v265 = vpop.f32.mrb[0].mxu0
  %v266 = vpop.f32.mrb[0].mxu0
  %v267 = vadd.f32 0.0, %v266
  %v268 = vpop.f32.mrb[0].mxu0
  %269 = vmatprep.mubr.bf16.mxu0 0
  %270 = vmatmul.mubr.bf16.gmra.mrb[0].mxu0 %v180
  %v271 = vpop.f32.mrb[0].mxu0
  %v272 = vadd.f32 0.0, %v271
  %v273 = vpop.f32.mrb[0].mxu0
  %v274 = vpop.f32.mrb[0].mxu0
  %v275 = vadd.f32 0.0, %v274
  %v276 = vpop.f32.mrb[0].mxu0
  %277 = vmatprep.mubr.bf16.mxu0 0
  %278 = vmatmul.mubr.bf16.gmra.mrb[0].mxu0 %v183
  %v279 = vpop.f32.mrb[0].mxu0
  %v280 = vadd.f32 0.0, %v279
  %v281 = vpop.f32.mrb[0].mxu0
  %v282 = vpop.f32.mrb[0].mxu0
  %v283 = vadd.f32 0.0, %v282
  %v284 = vpop.f32.mrb[0].mxu0
  %285 = vmatprep.mubr.bf16.mxu0 0
  %286 = vmatmul.mubr.bf16.gmra.mrb[0].mxu0 %v186
  %v287 = vpop.f32.mrb[0].mxu0
  %v288 = vadd.f32 0.0, %v287
  %v289 = vpop.f32.mrb[0].mxu0
  %v290 = vpop.f32.mrb[0].mxu0
  %v291 = vadd.f32 0.0, %v290
  %v292 = vpop.f32.mrb[0].mxu0
  %293 = vmatprep.mubr.bf16.mxu0 0
  %294 = vmatmul.mubr.bf16.gmra.mrb[0].mxu0 %v189
  %v295 = vpop.f32.mrb[0].mxu0
  %v296 = vadd.f32 0.0, %v295
  %v297 = vpop.f32.mrb[0].mxu0
  %v298 = vpop.f32.mrb[0].mxu0
  %v299 = vadd.f32 0.0, %v298
  %v300 = vpop.f32.mrb[0].mxu0
  %301 = vmatprep.mubr.bf16.mxu0 0
  %302 = vmatmul.mubr.bf16.gmra.mrb[0].mxu0 %v192
  %v303 = vpop.f32.mrb[0].mxu0
  %v304 = vadd.f32 0.0, %v303
  %v305 = vpop.f32.mrb[0].mxu0
  %v306 = vpop.f32.mrb[0].mxu0
  %v307 = vadd.f32 0.0, %v306
  %v308 = vpop.f32.mrb[0].mxu0
  %309 = vmatprep.mubr.bf16.mxu0 0
  %310 = vmatmul.mubr.bf16.gmra.mrb[0].mxu0 %v195
  %v311 = vpop.f32.mrb[0].mxu0
  %v312 = vadd.f32 0.0, %v311
  %v313 = vpop.f32.mrb[0].mxu0
  %v314 = vpop.f32.mrb[0].mxu0
  %v315 = vadd.f32 0.0, %v314
  %v316 = vpop.f32.mrb[0].mxu0
  %317 = vdwg.mxu0
  %v318 = vld [vmem:[%s3] sm:$0x1]
  %v320 = vlaneseq
  %v321 = vshrl.u32 %v320, 7
  %v322 = vsub.s32 0, %v321
  %v323 = vrot.slane %v318, %v322
  %v325 = vadd.f32 %v323, %v256
  %v326 = vadd.f32 %v323, %v259
  %v327 = vadd.f32 %v323, %v264
  %v328 = vadd.f32 %v323, %v267
  %v329 = vadd.f32 %v323, %v272
  %v330 = vadd.f32 %v323, %v275
  %v331 = vadd.f32 %v323, %v280
  %v332 = vadd.f32 %v323, %v283
  %v333 = vadd.f32 %v323, %v288
  %v334 = vadd.f32 %v323, %v291
  %v335 = vadd.f32 %v323, %v296
  %v336 = vadd.f32 %v323, %v299
  %v337 = vadd.f32 %v323, %v304
  %v338 = vadd.f32 %v323, %v307
  %v339 = vadd.f32 %v323, %v312
  %v340 = vadd.f32 %v323, %v315
  %v341 = vld [vmem:[%s4] sm:$0xff]
  %v342 = vld [vmem:[%s4 + $0x8] sm:$0xff]
  %v343 = vld [vmem:[%s4 + $0x10] sm:$0xff]
  %v344 = vld [vmem:[%s4 + $0x18] sm:$0xff]
  %v345 = vld [vmem:[%s4 + $0x20] sm:$0xff]
  %v346 = vld [vmem:[%s4 + $0x28] sm:$0xff]
  %v347 = vld [vmem:[%s4 + $0x30] sm:$0xff]
  %v348 = vld [vmem:[%s4 + $0x38] sm:$0xff]
  %v349 = vld [vmem:[%s4 + $0x40] sm:$0xff]
  %v350 = vld [vmem:[%s4 + $0x48] sm:$0xff]
  %v351 = vld [vmem:[%s4 + $0x50] sm:$0xff]
  %v352 = vld [vmem:[%s4 + $0x58] sm:$0xff]
  %v353 = vld [vmem:[%s4 + $0x60] sm:$0xff]
  %v354 = vld [vmem:[%s4 + $0x68] sm:$0xff]
  %v355 = vld [vmem:[%s4 + $0x70] sm:$0xff]
  %v356 = vld [vmem:[%s4 + $0x78] sm:$0xff]
  %v357 = vld [vmem:[%s5] sm:$0x1]
  %358 = vset.pattern.permute.xlu0 0
  %359 = vperm.xlu0 %358, %v341
  %v360 = vpop.permute.xlu0 %359
  %361 = vset.pattern.permute.xlu0 0
  %362 = vperm.xlu0 %361, %v342
  %v363 = vpop.permute.xlu0 %362
  %364 = vset.pattern.permute.xlu0 0
  %365 = vperm.xlu0 %364, %v343
  %v366 = vpop.permute.xlu0 %365
  %367 = vset.pattern.permute.xlu0 0
  %368 = vperm.xlu0 %367, %v344
  %v369 = vpop.permute.xlu0 %368
  %370 = vset.pattern.permute.xlu0 0
  %371 = vperm.xlu0 %370, %v345
  %v372 = vpop.permute.xlu0 %371
  %373 = vset.pattern.permute.xlu0 0
  %374 = vperm.xlu0 %373, %v346
  %v375 = vpop.permute.xlu0 %374
  %376 = vset.pattern.permute.xlu0 0
  %377 = vperm.xlu0 %376, %v347
  %v378 = vpop.permute.xlu0 %377
  %379 = vset.pattern.permute.xlu0 0
  %380 = vperm.xlu0 %379, %v348
  %v381 = vpop.permute.xlu0 %380
  %382 = vset.pattern.permute.xlu0 0
  %383 = vperm.xlu0 %382, %v349
  %v384 = vpop.permute.xlu0 %383
  %385 = vset.pattern.permute.xlu0 0
  %386 = vperm.xlu0 %385, %v350
  %v387 = vpop.permute.xlu0 %386
  %388 = vset.pattern.permute.xlu0 0
  %389 = vperm.xlu0 %388, %v351
  %v390 = vpop.permute.xlu0 %389
  %391 = vset.pattern.permute.xlu0 0
  %392 = vperm.xlu0 %391, %v352
  %v393 = vpop.permute.xlu0 %392
  %394 = vset.pattern.permute.xlu0 0
  %395 = vperm.xlu0 %394, %v353
  %v396 = vpop.permute.xlu0 %395
  %397 = vset.pattern.permute.xlu0 0
  %398 = vperm.xlu0 %397, %v354
  %v399 = vpop.permute.xlu0 %398
  %400 = vset.pattern.permute.xlu0 0
  %401 = vperm.xlu0 %400, %v355
  %v402 = vpop.permute.xlu0 %401
  %403 = vset.pattern.permute.xlu0 0
  %404 = vperm.xlu0 %403, %v356
  %v405 = vpop.permute.xlu0 %404
  %v406 = vlaneseq
  %v407 = vshrl.u32 %v406, 7
  %v408 = vsub.s32 0, %v407
  %v409 = vrot.slane %v357, %v408
  %vm410 = vcmp.eq.s32.totalorder %v360, %v409
  %vm411 = vcmp.eq.s32.totalorder %v363, %v409
  %vm412 = vcmp.eq.s32.totalorder %v366, %v409
  %vm413 = vcmp.eq.s32.totalorder %v369, %v409
  %vm414 = vcmp.eq.s32.totalorder %v372, %v409
  %vm415 = vcmp.eq.s32.totalorder %v375, %v409
  %vm416 = vcmp.eq.s32.totalorder %v378, %v409
  %vm417 = vcmp.eq.s32.totalorder %v381, %v409
  %vm418 = vcmp.eq.s32.totalorder %v384, %v409
  %vm419 = vcmp.eq.s32.totalorder %v387, %v409
  %vm420 = vcmp.eq.s32.totalorder %v390, %v409
  %vm421 = vcmp.eq.s32.totalorder %v393, %v409
  %vm422 = vcmp.eq.s32.totalorder %v396, %v409
  %vm423 = vcmp.eq.s32.totalorder %v399, %v409
  %vm424 = vcmp.eq.s32.totalorder %v402, %v409
  %vm425 = vcmp.eq.s32.totalorder %v405, %v409
  %v426 = vld [vmem:[#allocation2] sm:$0xff]
  %v427 = vld [vmem:[#allocation2 + $0x8] sm:$0xff]
  %v428 = vld [vmem:[#allocation2 + $0x10] sm:$0xff]
  %v429 = vld [vmem:[#allocation2 + $0x18] sm:$0xff]
  %v430 = vld [vmem:[#allocation2 + $0x20] sm:$0xff]
  %v431 = vld [vmem:[#allocation2 + $0x28] sm:$0xff]
  %v432 = vld [vmem:[#allocation2 + $0x30] sm:$0xff]
  %v433 = vld [vmem:[#allocation2 + $0x38] sm:$0xff]
  %v434 = vld [vmem:[#allocation2 + $0x40] sm:$0xff]
  %v435 = vld [vmem:[#allocation2 + $0x48] sm:$0xff]
  %v436 = vld [vmem:[#allocation2 + $0x50] sm:$0xff]
  %v437 = vld [vmem:[#allocation2 + $0x58] sm:$0xff]
  %v438 = vld [vmem:[#allocation2 + $0x60] sm:$0xff]
  %v439 = vld [vmem:[#allocation2 + $0x68] sm:$0xff]
  %v440 = vld [vmem:[#allocation2 + $0x70] sm:$0xff]
  %v441 = vld [vmem:[#allocation2 + $0x78] sm:$0xff]
  %v442 = vld [vmem:[#allocation3] sm:$0xff]
  %v443 = vld [vmem:[#allocation3 + $0x8] sm:$0xff]
  %v444 = vld [vmem:[#allocation3 + $0x10] sm:$0xff]
  %v445 = vld [vmem:[#allocation3 + $0x18] sm:$0xff]
  %v446 = vld [vmem:[#allocation3 + $0x20] sm:$0xff]
  %v447 = vld [vmem:[#allocation3 + $0x28] sm:$0xff]
  %v448 = vld [vmem:[#allocation3 + $0x30] sm:$0xff]
  %v449 = vld [vmem:[#allocation3 + $0x38] sm:$0xff]
  %v450 = vld [vmem:[#allocation3 + $0x40] sm:$0xff]
  %v451 = vld [vmem:[#allocation3 + $0x48] sm:$0xff]
  %v452 = vld [vmem:[#allocation3 + $0x50] sm:$0xff]
  %v453 = vld [vmem:[#allocation3 + $0x58] sm:$0xff]
  %v454 = vld [vmem:[#allocation3 + $0x60] sm:$0xff]
  %v455 = vld [vmem:[#allocation3 + $0x68] sm:$0xff]
  %v456 = vld [vmem:[#allocation3 + $0x70] sm:$0xff]
  %v457 = vld [vmem:[#allocation3 + $0x78] sm:$0xff]
  %v458 = vsel %vm410, %v325, -1e+30
  %v459 = vsel %vm411, %v326, -1e+30
  %v460 = vsel %vm412, %v327, -1e+30
  %v461 = vsel %vm413, %v328, -1e+30
  %v462 = vsel %vm414, %v329, -1e+30
  %v463 = vsel %vm415, %v330, -1e+30
  %v464 = vsel %vm416, %v331, -1e+30
  %v465 = vsel %vm417, %v332, -1e+30
  %v466 = vsel %vm418, %v333, -1e+30
  %v467 = vsel %vm419, %v334, -1e+30
  %v468 = vsel %vm420, %v335, -1e+30
  %v469 = vsel %vm421, %v336, -1e+30
  %v470 = vsel %vm422, %v337, -1e+30
  %v471 = vsel %vm423, %v338, -1e+30
  %v472 = vsel %vm424, %v339, -1e+30
  %v473 = vsel %vm425, %v340, -1e+30
  %v474 = vmax.f32 %v426, %v458
  %v475 = vmax.f32 %v427, %v459
  %v476 = vmax.f32 %v428, %v460
  %v477 = vmax.f32 %v429, %v461
  %v478 = vmax.f32 %v430, %v462
  %v479 = vmax.f32 %v431, %v463
  %v480 = vmax.f32 %v432, %v464
  %v481 = vmax.f32 %v433, %v465
  %v482 = vmax.f32 %v434, %v466
  %v483 = vmax.f32 %v435, %v467
  %v484 = vmax.f32 %v436, %v468
  %v485 = vmax.f32 %v437, %v469
  %v486 = vmax.f32 %v438, %v470
  %v487 = vmax.f32 %v439, %v471
  %v488 = vmax.f32 %v440, %v472
  %v489 = vmax.f32 %v441, %v473
  %v490 = vsel %vm410, 1e+30, %v325
  %v491 = vsel %vm411, 1e+30, %v326
  %v492 = vsel %vm412, 1e+30, %v327
  %v493 = vsel %vm413, 1e+30, %v328
  %v494 = vsel %vm414, 1e+30, %v329
  %v495 = vsel %vm415, 1e+30, %v330
  %v496 = vsel %vm416, 1e+30, %v331
  %v497 = vsel %vm417, 1e+30, %v332
  %v498 = vsel %vm418, 1e+30, %v333
  %v499 = vsel %vm419, 1e+30, %v334
  %v500 = vsel %vm420, 1e+30, %v335
  %v501 = vsel %vm421, 1e+30, %v336
  %v502 = vsel %vm422, 1e+30, %v337
  %v503 = vsel %vm423, 1e+30, %v338
  %v504 = vsel %vm424, 1e+30, %v339
  %v505 = vsel %vm425, 1e+30, %v340
  %v506 = vmin.f32 %v442, %v490
  %v507 = vmin.f32 %v443, %v491
  %v508 = vmin.f32 %v444, %v492
  %v509 = vmin.f32 %v445, %v493
  %v510 = vmin.f32 %v446, %v494
  %v511 = vmin.f32 %v447, %v495
  %v512 = vmin.f32 %v448, %v496
  %v513 = vmin.f32 %v449, %v497
  %v514 = vmin.f32 %v450, %v498
  %v515 = vmin.f32 %v451, %v499
  %v516 = vmin.f32 %v452, %v500
  %v517 = vmin.f32 %v453, %v501
  %v518 = vmin.f32 %v454, %v502
  %v519 = vmin.f32 %v455, %v503
  %v520 = vmin.f32 %v456, %v504
  %v521 = vmin.f32 %v457, %v505
  %522 = vst [vmem:[#allocation2] sm:$0xff] %v474
  %523 = vst [vmem:[#allocation2 + $0x8] sm:$0xff] %v475
  %524 = vst [vmem:[#allocation2 + $0x10] sm:$0xff] %v476
  %525 = vst [vmem:[#allocation2 + $0x18] sm:$0xff] %v477
  %526 = vst [vmem:[#allocation2 + $0x20] sm:$0xff] %v478
  %527 = vst [vmem:[#allocation2 + $0x28] sm:$0xff] %v479
  %528 = vst [vmem:[#allocation2 + $0x30] sm:$0xff] %v480
  %529 = vst [vmem:[#allocation2 + $0x38] sm:$0xff] %v481
  %530 = vst [vmem:[#allocation2 + $0x40] sm:$0xff] %v482
  %531 = vst [vmem:[#allocation2 + $0x48] sm:$0xff] %v483
  %532 = vst [vmem:[#allocation2 + $0x50] sm:$0xff] %v484
  %533 = vst [vmem:[#allocation2 + $0x58] sm:$0xff] %v485
  %534 = vst [vmem:[#allocation2 + $0x60] sm:$0xff] %v486
  %535 = vst [vmem:[#allocation2 + $0x68] sm:$0xff] %v487
  %536 = vst [vmem:[#allocation2 + $0x70] sm:$0xff] %v488
  %537 = vst [vmem:[#allocation2 + $0x78] sm:$0xff] %v489
  %538 = vst [vmem:[#allocation3] sm:$0xff] %v506
  %539 = vst [vmem:[#allocation3 + $0x8] sm:$0xff] %v507
  %540 = vst [vmem:[#allocation3 + $0x10] sm:$0xff] %v508
  %541 = vst [vmem:[#allocation3 + $0x18] sm:$0xff] %v509
  %542 = vst [vmem:[#allocation3 + $0x20] sm:$0xff] %v510
  %543 = vst [vmem:[#allocation3 + $0x28] sm:$0xff] %v511
  %544 = vst [vmem:[#allocation3 + $0x30] sm:$0xff] %v512
  %545 = vst [vmem:[#allocation3 + $0x38] sm:$0xff] %v513
  %546 = vst [vmem:[#allocation3 + $0x40] sm:$0xff] %v514
  %547 = vst [vmem:[#allocation3 + $0x48] sm:$0xff] %v515
  %548 = vst [vmem:[#allocation3 + $0x50] sm:$0xff] %v516
  %549 = vst [vmem:[#allocation3 + $0x58] sm:$0xff] %v517
  %550 = vst [vmem:[#allocation3 + $0x60] sm:$0xff] %v518
  %551 = vst [vmem:[#allocation3 + $0x68] sm:$0xff] %v519
  %552 = vst [vmem:[#allocation3 + $0x70] sm:$0xff] %v520
  %553 = vst [vmem:[#allocation3 + $0x78] sm:$0xff] %v521
  // Predicated region
  $region30: #{tpu_custom_call.1} parent=0 // pred_check
    %p554 = pneg %p24
  $region31: #{tpu_custom_call.1} parent=0 // pred_check_branch
    %556 = sbr.rel (%p554) target = $region33
  $region32: #{tpu_custom_call.1} parent=0 // pred_region
    %v557 = vld [vmem:[%s2] sm:$0xff]
    %v558 = vld [vmem:[%s2 + $0x8] sm:$0xff]
    %v559 = vld [vmem:[%s2 + $0x10] sm:$0xff]
    %v560 = vld [vmem:[%s2 + $0x18] sm:$0xff]
    %v561 = vld [vmem:[%s2 + $0x20] sm:$0xff]
    %v562 = vld [vmem:[%s2 + $0x28] sm:$0xff]
    %v563 = vld [vmem:[%s2 + $0x30] sm:$0xff]
    %v564 = vld [vmem:[%s2 + $0x38] sm:$0xff]
    %v565 = vld [vmem:[%s2 + $0x40] sm:$0xff]
    %v566 = vld [vmem:[%s2 + $0x48] sm:$0xff]
    %v567 = vld [vmem:[%s2 + $0x50] sm:$0xff]
    %v568 = vld [vmem:[%s2 + $0x58] sm:$0xff]
    %v569 = vld [vmem:[%s2 + $0x60] sm:$0xff]
    %v570 = vld [vmem:[%s2 + $0x68] sm:$0xff]
    %v571 = vld [vmem:[%s2 + $0x70] sm:$0xff]
    %v572 = vld [vmem:[%s2 + $0x78] sm:$0xff]
    %v573 = vld [vmem:[#allocation2] sm:$0xff]
    %v574 = vld [vmem:[#allocation2 + $0x8] sm:$0xff]
    %v575 = vld [vmem:[#allocation2 + $0x10] sm:$0xff]
    %v576 = vld [vmem:[#allocation2 + $0x18] sm:$0xff]
    %v577 = vld [vmem:[#allocation2 + $0x20] sm:$0xff]
    %v578 = vld [vmem:[#allocation2 + $0x28] sm:$0xff]
    %v579 = vld [vmem:[#allocation2 + $0x30] sm:$0xff]
    %v580 = vld [vmem:[#allocation2 + $0x38] sm:$0xff]
    %v581 = vld [vmem:[#allocation2 + $0x40] sm:$0xff]
    %v582 = vld [vmem:[#allocation2 + $0x48] sm:$0xff]
    %v583 = vld [vmem:[#allocation2 + $0x50] sm:$0xff]
    %v584 = vld [vmem:[#allocation2 + $0x58] sm:$0xff]
    %v585 = vld [vmem:[#allocation2 + $0x60] sm:$0xff]
    %v586 = vld [vmem:[#allocation2 + $0x68] sm:$0xff]
    %v587 = vld [vmem:[#allocation2 + $0x70] sm:$0xff]
    %v588 = vld [vmem:[#allocation2 + $0x78] sm:$0xff]
    %589 = vmax.xlane.f32.xlu0 %v573
    %v590 = vpop.xlane.xlu0 %589
    %591 = vmax.xlane.f32.xlu0 %v574
    %v592 = vpop.xlane.xlu0 %591
    %593 = vmax.xlane.f32.xlu0 %v575
    %v594 = vpop.xlane.xlu0 %593
    %595 = vmax.xlane.f32.xlu0 %v576
    %v596 = vpop.xlane.xlu0 %595
    %597 = vmax.xlane.f32.xlu0 %v577
    %v598 = vpop.xlane.xlu0 %597
    %599 = vmax.xlane.f32.xlu0 %v578
    %v600 = vpop.xlane.xlu0 %599
    %601 = vmax.xlane.f32.xlu0 %v579
    %v602 = vpop.xlane.xlu0 %601
    %603 = vmax.xlane.f32.xlu0 %v580
    %v604 = vpop.xlane.xlu0 %603
    %605 = vmax.xlane.f32.xlu0 %v581
    %v606 = vpop.xlane.xlu0 %605
    %607 = vmax.xlane.f32.xlu0 %v582
    %v608 = vpop.xlane.xlu0 %607
    %609 = vmax.xlane.f32.xlu0 %v583
    %v610 = vpop.xlane.xlu0 %609
    %611 = vmax.xlane.f32.xlu0 %v584
    %v612 = vpop.xlane.xlu0 %611
    %613 = vmax.xlane.f32.xlu0 %v585
    %v614 = vpop.xlane.xlu0 %613
    %615 = vmax.xlane.f32.xlu0 %v586
    %v616 = vpop.xlane.xlu0 %615
    %617 = vmax.xlane.f32.xlu0 %v587
    %v618 = vpop.xlane.xlu0 %617
    %619 = vmax.xlane.f32.xlu0 %v588
    %v620 = vpop.xlane.xlu0 %619
    %v621 = vadd.f32 %v590, %v557
    %v622 = vadd.f32 %v592, %v558
    %v623 = vadd.f32 %v594, %v559
    %v624 = vadd.f32 %v596, %v560
    %v625 = vadd.f32 %v598, %v561
    %v626 = vadd.f32 %v600, %v562
    %v627 = vadd.f32 %v602, %v563
    %v628 = vadd.f32 %v604, %v564
    %v629 = vadd.f32 %v606, %v565
    %v630 = vadd.f32 %v608, %v566
    %v631 = vadd.f32 %v610, %v567
    %v632 = vadd.f32 %v612, %v568
    %v633 = vadd.f32 %v614, %v569
    %v634 = vadd.f32 %v616, %v570
    %v635 = vadd.f32 %v618, %v571
    %v636 = vadd.f32 %v620, %v572
    %v637 = vmax.f32 %v621, 1e-12
    %v638 = vmax.f32 %v622, 1e-12
    %v639 = vmax.f32 %v623, 1e-12
    %v640 = vmax.f32 %v624, 1e-12
    %v641 = vmax.f32 %v625, 1e-12
    %v642 = vmax.f32 %v626, 1e-12
    %v643 = vmax.f32 %v627, 1e-12
    %v644 = vmax.f32 %v628, 1e-12
    %v645 = vmax.f32 %v629, 1e-12
    %v646 = vmax.f32 %v630, 1e-12
    %v647 = vmax.f32 %v631, 1e-12
    %v648 = vmax.f32 %v632, 1e-12
    %v649 = vmax.f32 %v633, 1e-12
    %v650 = vmax.f32 %v634, 1e-12
    %v651 = vmax.f32 %v635, 1e-12
    %v652 = vmax.f32 %v636, 1e-12
    %v653 = vld [vmem:[#allocation3] sm:$0xff]
    %v654 = vld [vmem:[#allocation3 + $0x8] sm:$0xff]
    %v655 = vld [vmem:[#allocation3 + $0x10] sm:$0xff]
    %v656 = vld [vmem:[#allocation3 + $0x18] sm:$0xff]
    %v657 = vld [vmem:[#allocation3 + $0x20] sm:$0xff]
    %v658 = vld [vmem:[#allocation3 + $0x28] sm:$0xff]
    %v659 = vld [vmem:[#allocation3 + $0x30] sm:$0xff]
    %v660 = vld [vmem:[#allocation3 + $0x38] sm:$0xff]
    %v661 = vld [vmem:[#allocation3 + $0x40] sm:$0xff]
    %v662 = vld [vmem:[#allocation3 + $0x48] sm:$0xff]
    %v663 = vld [vmem:[#allocation3 + $0x50] sm:$0xff]
    %v664 = vld [vmem:[#allocation3 + $0x58] sm:$0xff]
    %v665 = vld [vmem:[#allocation3 + $0x60] sm:$0xff]
    %v666 = vld [vmem:[#allocation3 + $0x68] sm:$0xff]
    %v667 = vld [vmem:[#allocation3 + $0x70] sm:$0xff]
    %v668 = vld [vmem:[#allocation3 + $0x78] sm:$0xff]
    %669 = vmin.xlane.f32.xlu0 %v653
    %v670 = vpop.xlane.xlu0 %669
    %671 = vmin.xlane.f32.xlu0 %v654
    %v672 = vpop.xlane.xlu0 %671
    %673 = vmin.xlane.f32.xlu0 %v655
    %v674 = vpop.xlane.xlu0 %673
    %675 = vmin.xlane.f32.xlu0 %v656
    %v676 = vpop.xlane.xlu0 %675
    %677 = vmin.xlane.f32.xlu0 %v657
    %v678 = vpop.xlane.xlu0 %677
    %679 = vmin.xlane.f32.xlu0 %v658
    %v680 = vpop.xlane.xlu0 %679
    %681 = vmin.xlane.f32.xlu0 %v659
    %v682 = vpop.xlane.xlu0 %681
    %683 = vmin.xlane.f32.xlu0 %v660
    %v684 = vpop.xlane.xlu0 %683
    %685 = vmin.xlane.f32.xlu0 %v661
    %v686 = vpop.xlane.xlu0 %685
    %687 = vmin.xlane.f32.xlu0 %v662
    %v688 = vpop.xlane.xlu0 %687
    %689 = vmin.xlane.f32.xlu0 %v663
    %v690 = vpop.xlane.xlu0 %689
    %691 = vmin.xlane.f32.xlu0 %v664
    %v692 = vpop.xlane.xlu0 %691
    %693 = vmin.xlane.f32.xlu0 %v665
    %v694 = vpop.xlane.xlu0 %693
    %695 = vmin.xlane.f32.xlu0 %v666
    %v696 = vpop.xlane.xlu0 %695
    %697 = vmin.xlane.f32.xlu0 %v667
    %v698 = vpop.xlane.xlu0 %697
    %699 = vmin.xlane.f32.xlu0 %v668
    %v700 = vpop.xlane.xlu0 %699
    %v701 = vadd.f32 %v670, %v557
    %v702 = vadd.f32 %v672, %v558
    %v703 = vadd.f32 %v674, %v559
    %v704 = vadd.f32 %v676, %v560
    %v705 = vadd.f32 %v678, %v561
    %v706 = vadd.f32 %v680, %v562
    %v707 = vadd.f32 %v682, %v563
    %v708 = vadd.f32 %v684, %v564
    %v709 = vadd.f32 %v686, %v565
    %v710 = vadd.f32 %v688, %v566
    %v711 = vadd.f32 %v690, %v567
    %v712 = vadd.f32 %v692, %v568
    %v713 = vadd.f32 %v694, %v569
    %v714 = vadd.f32 %v696, %v570
    %v715 = vadd.f32 %v698, %v571
    %v716 = vadd.f32 %v700, %v572
    %v717 = vmax.f32 %v701, 1e-12
    %v718 = vmax.f32 %v702, 1e-12
    %v719 = vmax.f32 %v703, 1e-12
    %v720 = vmax.f32 %v704, 1e-12
    %v721 = vmax.f32 %v705, 1e-12
    %v722 = vmax.f32 %v706, 1e-12
    %v723 = vmax.f32 %v707, 1e-12
    %v724 = vmax.f32 %v708, 1e-12
    %v725 = vmax.f32 %v709, 1e-12
    %v726 = vmax.f32 %v710, 1e-12
    %v727 = vmax.f32 %v711, 1e-12
    %v728 = vmax.f32 %v712, 1e-12
    %v729 = vmax.f32 %v713, 1e-12
    %v730 = vmax.f32 %v714, 1e-12
    %v731 = vmax.f32 %v715, 1e-12
    %v732 = vmax.f32 %v716, 1e-12
    %v733 = vrsqrt.pop %v637
    %v734 = vmul.f32 %v637, %v733
    %vm735 = vcmp.eq.f32.partialorder %v637, inf
    %v736 = vsel %vm735, %v637, %v734
    %vm737 = vcmp.eq.f32.partialorder %v637, 0.0
    %v738 = vand.u32 %v637, 2147483648
    %v739 = vsel %vm737, %v738, %v736
    %v740 = vrsqrt.pop %v638
    %v741 = vmul.f32 %v638, %v740
    %vm742 = vcmp.eq.f32.partialorder %v638, inf
    %v743 = vsel %vm742, %v638, %v741
    %vm744 = vcmp.eq.f32.partialorder %v638, 0.0
    %v745 = vand.u32 %v638, 2147483648
    %v746 = vsel %vm744, %v745, %v743
    %v747 = vrsqrt.pop %v639
    %v748 = vmul.f32 %v639, %v747
    %vm749 = vcmp.eq.f32.partialorder %v639, inf
    %v750 = vsel %vm749, %v639, %v748
    %vm751 = vcmp.eq.f32.partialorder %v639, 0.0
    %v752 = vand.u32 %v639, 2147483648
    %v753 = vsel %vm751, %v752, %v750
    %v754 = vrsqrt.pop %v640
    %v755 = vmul.f32 %v640, %v754
    %vm756 = vcmp.eq.f32.partialorder %v640, inf
    %v757 = vsel %vm756, %v640, %v755
    %vm758 = vcmp.eq.f32.partialorder %v640, 0.0
    %v759 = vand.u32 %v640, 2147483648
    %v760 = vsel %vm758, %v759, %v757
    %v761 = vrsqrt.pop %v641
    %v762 = vmul.f32 %v641, %v761
    %vm763 = vcmp.eq.f32.partialorder %v641, inf
    %v764 = vsel %vm763, %v641, %v762
    %vm765 = vcmp.eq.f32.partialorder %v641, 0.0
    %v766 = vand.u32 %v641, 2147483648
    %v767 = vsel %vm765, %v766, %v764
    %v768 = vrsqrt.pop %v642
    %v769 = vmul.f32 %v642, %v768
    %vm770 = vcmp.eq.f32.partialorder %v642, inf
    %v771 = vsel %vm770, %v642, %v769
    %vm772 = vcmp.eq.f32.partialorder %v642, 0.0
    %v773 = vand.u32 %v642, 2147483648
    %v774 = vsel %vm772, %v773, %v771
    %v775 = vrsqrt.pop %v643
    %v776 = vmul.f32 %v643, %v775
    %vm777 = vcmp.eq.f32.partialorder %v643, inf
    %v778 = vsel %vm777, %v643, %v776
    %vm779 = vcmp.eq.f32.partialorder %v643, 0.0
    %v780 = vand.u32 %v643, 2147483648
    %v781 = vsel %vm779, %v780, %v778
    %v782 = vrsqrt.pop %v644
    %v783 = vmul.f32 %v644, %v782
    %vm784 = vcmp.eq.f32.partialorder %v644, inf
    %v785 = vsel %vm784, %v644, %v783
    %vm786 = vcmp.eq.f32.partialorder %v644, 0.0
    %v787 = vand.u32 %v644, 2147483648
    %v788 = vsel %vm786, %v787, %v785
    %v789 = vrsqrt.pop %v645
    %v790 = vmul.f32 %v645, %v789
    %vm791 = vcmp.eq.f32.partialorder %v645, inf
    %v792 = vsel %vm791, %v645, %v790
    %vm793 = vcmp.eq.f32.partialorder %v645, 0.0
    %v794 = vand.u32 %v645, 2147483648
    %v795 = vsel %vm793, %v794, %v792
    %v796 = vrsqrt.pop %v646
    %v797 = vmul.f32 %v646, %v796
    %vm798 = vcmp.eq.f32.partialorder %v646, inf
    %v799 = vsel %vm798, %v646, %v797
    %vm800 = vcmp.eq.f32.partialorder %v646, 0.0
    %v801 = vand.u32 %v646, 2147483648
    %v802 = vsel %vm800, %v801, %v799
    %v803 = vrsqrt.pop %v647
    %v804 = vmul.f32 %v647, %v803
    %vm805 = vcmp.eq.f32.partialorder %v647, inf
    %v806 = vsel %vm805, %v647, %v804
    %vm807 = vcmp.eq.f32.partialorder %v647, 0.0
    %v808 = vand.u32 %v647, 2147483648
    %v809 = vsel %vm807, %v808, %v806
    %v810 = vrsqrt.pop %v648
    %v811 = vmul.f32 %v648, %v810
    %vm812 = vcmp.eq.f32.partialorder %v648, inf
    %v813 = vsel %vm812, %v648, %v811
    %vm814 = vcmp.eq.f32.partialorder %v648, 0.0
    %v815 = vand.u32 %v648, 2147483648
    %v816 = vsel %vm814, %v815, %v813
    %v817 = vrsqrt.pop %v649
    %v818 = vmul.f32 %v649, %v817
    %vm819 = vcmp.eq.f32.partialorder %v649, inf
    %v820 = vsel %vm819, %v649, %v818
    %vm821 = vcmp.eq.f32.partialorder %v649, 0.0
    %v822 = vand.u32 %v649, 2147483648
    %v823 = vsel %vm821, %v822, %v820
    %v824 = vrsqrt.pop %v650
    %v825 = vmul.f32 %v650, %v824
    %vm826 = vcmp.eq.f32.partialorder %v650, inf
    %v827 = vsel %vm826, %v650, %v825
    %vm828 = vcmp.eq.f32.partialorder %v650, 0.0
    %v829 = vand.u32 %v650, 2147483648
    %v830 = vsel %vm828, %v829, %v827
    %v831 = vrsqrt.pop %v651
    %v832 = vmul.f32 %v651, %v831
    %vm833 = vcmp.eq.f32.partialorder %v651, inf
    %v834 = vsel %vm833, %v651, %v832
    %vm835 = vcmp.eq.f32.partialorder %v651, 0.0
    %v836 = vand.u32 %v651, 2147483648
    %v837 = vsel %vm835, %v836, %v834
    %v838 = vrsqrt.pop %v652
    %v839 = vmul.f32 %v652, %v838
    %vm840 = vcmp.eq.f32.partialorder %v652, inf
    %v841 = vsel %vm840, %v652, %v839
    %vm842 = vcmp.eq.f32.partialorder %v652, 0.0
    %v843 = vand.u32 %v652, 2147483648
    %v844 = vsel %vm842, %v843, %v841
    %v845 = vrsqrt.pop %v717
    %v846 = vmul.f32 %v717, %v845
    %vm847 = vcmp.eq.f32.partialorder %v717, inf
    %v848 = vsel %vm847, %v717, %v846
    %vm849 = vcmp.eq.f32.partialorder %v717, 0.0
    %v850 = vand.u32 %v717, 2147483648
    %v851 = vsel %vm849, %v850, %v848
    %v852 = vrsqrt.pop %v718
    %v853 = vmul.f32 %v718, %v852
    %vm854 = vcmp.eq.f32.partialorder %v718, inf
    %v855 = vsel %vm854, %v718, %v853
    %vm856 = vcmp.eq.f32.partialorder %v718, 0.0
    %v857 = vand.u32 %v718, 2147483648
    %v858 = vsel %vm856, %v857, %v855
    %v859 = vrsqrt.pop %v719
    %v860 = vmul.f32 %v719, %v859
    %vm861 = vcmp.eq.f32.partialorder %v719, inf
    %v862 = vsel %vm861, %v719, %v860
    %vm863 = vcmp.eq.f32.partialorder %v719, 0.0
    %v864 = vand.u32 %v719, 2147483648
    %v865 = vsel %vm863, %v864, %v862
    %v866 = vrsqrt.pop %v720
    %v867 = vmul.f32 %v720, %v866
    %vm868 = vcmp.eq.f32.partialorder %v720, inf
    %v869 = vsel %vm868, %v720, %v867
    %vm870 = vcmp.eq.f32.partialorder %v720, 0.0
    %v871 = vand.u32 %v720, 2147483648
    %v872 = vsel %vm870, %v871, %v869
    %v873 = vrsqrt.pop %v721
    %v874 = vmul.f32 %v721, %v873
    %vm875 = vcmp.eq.f32.partialorder %v721, inf
    %v876 = vsel %vm875, %v721, %v874
    %vm877 = vcmp.eq.f32.partialorder %v721, 0.0
    %v878 = vand.u32 %v721, 2147483648
    %v879 = vsel %vm877, %v878, %v876
    %v880 = vrsqrt.pop %v722
    %v881 = vmul.f32 %v722, %v880
    %vm882 = vcmp.eq.f32.partialorder %v722, inf
    %v883 = vsel %vm882, %v722, %v881
    %vm884 = vcmp.eq.f32.partialorder %v722, 0.0
    %v885 = vand.u32 %v722, 2147483648
    %v886 = vsel %vm884, %v885, %v883
    %v887 = vrsqrt.pop %v723
    %v888 = vmul.f32 %v723, %v887
    %vm889 = vcmp.eq.f32.partialorder %v723, inf
    %v890 = vsel %vm889, %v723, %v888
    %vm891 = vcmp.eq.f32.partialorder %v723, 0.0
    %v892 = vand.u32 %v723, 2147483648
    %v893 = vsel %vm891, %v892, %v890
    %v894 = vrsqrt.pop %v724
    %v895 = vmul.f32 %v724, %v894
    %vm896 = vcmp.eq.f32.partialorder %v724, inf
    %v897 = vsel %vm896, %v724, %v895
    %vm898 = vcmp.eq.f32.partialorder %v724, 0.0
    %v899 = vand.u32 %v724, 2147483648
    %v900 = vsel %vm898, %v899, %v897
    %v901 = vrsqrt.pop %v725
    %v902 = vmul.f32 %v725, %v901
    %vm903 = vcmp.eq.f32.partialorder %v725, inf
    %v904 = vsel %vm903, %v725, %v902
    %vm905 = vcmp.eq.f32.partialorder %v725, 0.0
    %v906 = vand.u32 %v725, 2147483648
    %v907 = vsel %vm905, %v906, %v904
    %v908 = vrsqrt.pop %v726
    %v909 = vmul.f32 %v726, %v908
    %vm910 = vcmp.eq.f32.partialorder %v726, inf
    %v911 = vsel %vm910, %v726, %v909
    %vm912 = vcmp.eq.f32.partialorder %v726, 0.0
    %v913 = vand.u32 %v726, 2147483648
    %v914 = vsel %vm912, %v913, %v911
    %v915 = vrsqrt.pop %v727
    %v916 = vmul.f32 %v727, %v915
    %vm917 = vcmp.eq.f32.partialorder %v727, inf
    %v918 = vsel %vm917, %v727, %v916
    %vm919 = vcmp.eq.f32.partialorder %v727, 0.0
    %v920 = vand.u32 %v727, 2147483648
    %v921 = vsel %vm919, %v920, %v918
    %v922 = vrsqrt.pop %v728
    %v923 = vmul.f32 %v728, %v922
    %vm924 = vcmp.eq.f32.partialorder %v728, inf
    %v925 = vsel %vm924, %v728, %v923
    %vm926 = vcmp.eq.f32.partialorder %v728, 0.0
    %v927 = vand.u32 %v728, 2147483648
    %v928 = vsel %vm926, %v927, %v925
    %v929 = vrsqrt.pop %v729
    %v930 = vmul.f32 %v729, %v929
    %vm931 = vcmp.eq.f32.partialorder %v729, inf
    %v932 = vsel %vm931, %v729, %v930
    %vm933 = vcmp.eq.f32.partialorder %v729, 0.0
    %v934 = vand.u32 %v729, 2147483648
    %v935 = vsel %vm933, %v934, %v932
    %v936 = vrsqrt.pop %v730
    %v937 = vmul.f32 %v730, %v936
    %vm938 = vcmp.eq.f32.partialorder %v730, inf
    %v939 = vsel %vm938, %v730, %v937
    %vm940 = vcmp.eq.f32.partialorder %v730, 0.0
    %v941 = vand.u32 %v730, 2147483648
    %v942 = vsel %vm940, %v941, %v939
    %v943 = vrsqrt.pop %v731
    %v944 = vmul.f32 %v731, %v943
    %vm945 = vcmp.eq.f32.partialorder %v731, inf
    %v946 = vsel %vm945, %v731, %v944
    %vm947 = vcmp.eq.f32.partialorder %v731, 0.0
    %v948 = vand.u32 %v731, 2147483648
    %v949 = vsel %vm947, %v948, %v946
    %v950 = vrsqrt.pop %v732
    %v951 = vmul.f32 %v732, %v950
    %vm952 = vcmp.eq.f32.partialorder %v732, inf
    %v953 = vsel %vm952, %v732, %v951
    %vm954 = vcmp.eq.f32.partialorder %v732, 0.0
    %v955 = vand.u32 %v732, 2147483648
    %v956 = vsel %vm954, %v955, %v953
    %v957 = vsub.f32 %v739, %v851
    %v958 = vsub.f32 %v746, %v858
    %v959 = vsub.f32 %v753, %v865
    %v960 = vsub.f32 %v760, %v872
    %v961 = vsub.f32 %v767, %v879
    %v962 = vsub.f32 %v774, %v886
    %v963 = vsub.f32 %v781, %v893
    %v964 = vsub.f32 %v788, %v900
    %v965 = vsub.f32 %v795, %v907
    %v966 = vsub.f32 %v802, %v914
    %v967 = vsub.f32 %v809, %v921
    %v968 = vsub.f32 %v816, %v928
    %v969 = vsub.f32 %v823, %v935
    %v970 = vsub.f32 %v830, %v942
    %v971 = vsub.f32 %v837, %v949
    %v972 = vsub.f32 %v844, %v956
    %v973 = vadd.f32 %v957, 5.0
    %v974 = vadd.f32 %v958, 5.0
    %v975 = vadd.f32 %v959, 5.0
    %v976 = vadd.f32 %v960, 5.0
    %v977 = vadd.f32 %v961, 5.0
    %v978 = vadd.f32 %v962, 5.0
    %v979 = vadd.f32 %v963, 5.0
    %v980 = vadd.f32 %v964, 5.0
    %v981 = vadd.f32 %v965, 5.0
    %v982 = vadd.f32 %v966, 5.0
    %v983 = vadd.f32 %v967, 5.0
    %v984 = vadd.f32 %v968, 5.0
    %v985 = vadd.f32 %v969, 5.0
    %v986 = vadd.f32 %v970, 5.0
    %v987 = vadd.f32 %v971, 5.0
    %v988 = vadd.f32 %v972, 5.0
    %v989 = vmax.f32 %v973, 0.0
    %v990 = vmax.f32 %v974, 0.0
    %v991 = vmax.f32 %v975, 0.0
    %v992 = vmax.f32 %v976, 0.0
    %v993 = vmax.f32 %v977, 0.0
    %v994 = vmax.f32 %v978, 0.0
    %v995 = vmax.f32 %v979, 0.0
    %v996 = vmax.f32 %v980, 0.0
    %v997 = vmax.f32 %v981, 0.0
    %v998 = vmax.f32 %v982, 0.0
    %v999 = vmax.f32 %v983, 0.0
    %v1000 = vmax.f32 %v984, 0.0
    %v1001 = vmax.f32 %v985, 0.0
    %v1002 = vmax.f32 %v986, 0.0
    %v1003 = vmax.f32 %v987, 0.0
    %v1004 = vmax.f32 %v988, 0.0
    %vm1005 = vcmask 7168
    %1006 = vst.msk [vmem:[%s6] sm:$0xff] %vm1005, %v989
    %1007 = vst.msk [vmem:[%s6 + $0x8] sm:$0xff] %vm1005, %v990
    %1008 = vst.msk [vmem:[%s6 + $0x10] sm:$0xff] %vm1005, %v991
    %1009 = vst.msk [vmem:[%s6 + $0x18] sm:$0xff] %vm1005, %v992
    %1010 = vst.msk [vmem:[%s6 + $0x20] sm:$0xff] %vm1005, %v993
    %1011 = vst.msk [vmem:[%s6 + $0x28] sm:$0xff] %vm1005, %v994
    %1012 = vst.msk [vmem:[%s6 + $0x30] sm:$0xff] %vm1005, %v995
    %1013 = vst.msk [vmem:[%s6 + $0x38] sm:$0xff] %vm1005, %v996
    %1014 = vst.msk [vmem:[%s6 + $0x40] sm:$0xff] %vm1005, %v997
    %1015 = vst.msk [vmem:[%s6 + $0x48] sm:$0xff] %vm1005, %v998
    %1016 = vst.msk [vmem:[%s6 + $0x50] sm:$0xff] %vm1005, %v999
    %1017 = vst.msk [vmem:[%s6 + $0x58] sm:$0xff] %vm1005, %v1000
    %1018 = vst.msk [vmem:[%s6 + $0x60] sm:$0xff] %vm1005, %v1001
    %1019 = vst.msk [vmem:[%s6 + $0x68] sm:$0xff] %vm1005, %v1002
    %1020 = vst.msk [vmem:[%s6 + $0x70] sm:$0xff] %vm1005, %v1003
    %1021 = vst.msk [vmem:[%s6 + $0x78] sm:$0xff] %vm1005, %v1004
  $region33: #{tpu_custom_call.1} parent=0 // pred_fallthru
    _
  // Predicated region
  $region34: #{tpu_custom_call.1} parent=0 // pred_check
    _
  $region35: #{tpu_custom_call.1} parent=0 // pred_check_branch
    %1023 = sbr.rel (0) target = $region37
  $region36: #{tpu_custom_call.1} parent=0 // pred_region
    _
  $region37: #{tpu_custom_call.1} parent=0 // pred_fallthru
    _
  // Predicated region
  $region38: #{tpu_custom_call.1} parent=0 // pred_check
    _
  $region39: #{tpu_custom_call.1} parent=0 // pred_check_branch
    %1025 = sbr.rel (0) target = $region41
  $region40: #{tpu_custom_call.1} parent=0 // pred_region
    _
  $region41: #{tpu_custom_call.1} parent=0 // pred_fallthru
    _

</llo_original>
